<compile_context>
chip_gen: v7x
topology: tpu7x:2x2x1
jax: 0.10.0
libtpu: 0.0.40
codegen_flags: <defaults>
</compile_context>

<pallas_src>
import functools

import jax
import jax.numpy as jnp
from jax.experimental import pallas as pl
from jax.experimental.pallas import tpu as pltpu


FUSED_MAX_NODES = 1024   # whole padded problem fits comfortably in VMEM -> fuse layers
TILE = 512               # row / reduction tile for the large-N tiled path


def _round_up(x, m):
    return ((x + m - 1) // m) * m


# ----------------------------------------------------------------------------
# Fused small-N kernel: both GCN layers in one pallas_call, everything in VMEM.
#   out = A_hat @ relu(A_hat @ X @ W1 + b1) @ W2 + b2
#   A_hat = D^-1/2 (A + I) D^-1/2, applied as exact diagonal scalings of the 0/1 A.
# ----------------------------------------------------------------------------
def gnn_fused_kernel(a_ref, d_ref, x_ref, w1_ref, b1_ref, w2_ref, b2_ref, out_ref):
    a = a_ref[...].astype(jnp.float32)   # 0/1(+I) adjacency, exact in bf16 -> f32
    d = d_ref[...]                       # (n_pad, 1) f32 D^-1/2 (0 on padded rows)

    # Layer 1: H = relu((d_i * (A @ (d_j * X))) @ W1 + b1)
    agg1 = jnp.dot(a, d * x_ref[...], preferred_element_type=jnp.float32)
    h = jnp.maximum(
        jnp.dot(d * agg1, w1_ref[...], preferred_element_type=jnp.float32)
        + b1_ref[...], 0.0)

    # Layer 2: out = (d_i * (A @ (d_j * H))) @ W2 + b2
    agg2 = jnp.dot(a, d * h, preferred_element_type=jnp.float32)
    out_ref[...] = (jnp.dot(d * agg2, w2_ref[...], preferred_element_type=jnp.float32)
                    + b2_ref[...])


def gnn_fused(a01, d, x, w1, b1, w2, b2):
    n_pad = a01.shape[0]
    f_out = w2.shape[1]
    return pl.pallas_call(
        gnn_fused_kernel,
        out_shape=jax.ShapeDtypeStruct((n_pad, f_out), jnp.float32),
        compiler_params=pltpu.CompilerParams(vmem_limit_bytes=32 * 1024 * 1024),
    )(a01, d, x, w1, b1, w2, b2)


# ----------------------------------------------------------------------------
# Tiled large-N kernel for one GCN layer:
#   out = maybe_scale(maybe_relu((d_i * (A01 @ V)) @ W + b))
# V is either the (already d_j-pre-scaled) node features or the previous layer's
# pre-scaled activations; A01 is the exact 0/1(+I) adjacency in bf16.
# ----------------------------------------------------------------------------
def gcn_layer_kernel(a_ref, v_ref, w_ref, b_ref, d_ref, out_ref, acc_ref, *,
                     apply_relu, scale_out, tk, v_resident):
    k = pl.program_id(1)

    @pl.when(k == 0)
    def _():
        acc_ref[...] = jnp.zeros_like(acc_ref)

    if v_resident:
        # V is resident in VMEM (DMA'd once); slice this reduction window.
        start = pl.multiple_of(k * tk, tk)
        vk = v_ref[pl.ds(start, tk), :]
    else:
        vk = v_ref[...]

    # MXU accumulate of the O(N^2) aggregation: (tm, tk) bf16 @ (tk, f) bf16 -> f32
    acc_ref[...] += jnp.dot(a_ref[...], vk, preferred_element_type=jnp.float32)

    @pl.when(k == pl.num_programs(1) - 1)
    def _():
        d = d_ref[...]                                        # (tm, 1) f32 D^-1/2 rows
        # Keep the f32 accumulator precision through the small projection.
        y = jnp.dot(d * acc_ref[...], w_ref[...],
                    preferred_element_type=jnp.float32) + b_ref[...]
        if apply_relu:
            y = jnp.maximum(y, 0.0)
        if scale_out:
            y = d * y     # pre-scale rows for the next layer's aggregation (exact)
        out_ref[...] = y.astype(out_ref.dtype)


def gcn_layer_tiled(a01, v, w, b, d, *, apply_relu, scale_out, out_dtype, tm, tk):
    n_pad = a01.shape[0]
    f_in = v.shape[1]
    f_out = w.shape[1]
    grid = (n_pad // tm, n_pad // tk)
    out_bytes = jnp.dtype(out_dtype).itemsize

    # Make X / H resident (DMA once) unless it would not fit the VMEM budget.
    fixed_vmem = (2 * tm * tk * a01.dtype.itemsize          # A tiles (double buffered)
                  + 2 * tm * f_out * out_bytes               # out tiles
                  + tm * f_in * 4                            # f32 accumulator
                  + 2 * (f_in * f_out + f_out + tm) * 4)     # W, b, d (generous)
    v_bytes = 2 * v.size * v.dtype.itemsize
    v_resident = (fixed_vmem + v_bytes) <= 40 * 1024 * 1024

    if v_resident:
        v_spec = pl.BlockSpec((n_pad, f_in), lambda i, k: (0, 0))   # resident
    else:
        v_spec = pl.BlockSpec((tk, f_in), lambda i, k: (k, 0))      # streamed per k

    flops = int(2 * n_pad * n_pad * f_in + 2 * n_pad * f_in * f_out)
    bytes_accessed = int(a01.size * a01.dtype.itemsize
                         + v.size * v.dtype.itemsize
                         + w.size * 4 + b.size * 4 + d.size * 4
                         + n_pad * f_out * out_bytes)

    return pl.pallas_call(
        functools.partial(gcn_layer_kernel, apply_relu=apply_relu,
                          scale_out=scale_out, tk=tk, v_resident=v_resident),
        out_shape=jax.ShapeDtypeStruct((n_pad, f_out), out_dtype),
        grid_spec=pltpu.PrefetchScalarGridSpec(
            num_scalar_prefetch=0,
            grid=grid,
            in_specs=[
                pl.BlockSpec((tm, tk), lambda i, k: (i, k)),        # A01 tile
                v_spec,                                             # X / H
                pl.BlockSpec((f_in, f_out), lambda i, k: (0, 0)),   # W (resident, f32)
                pl.BlockSpec((1, f_out), lambda i, k: (0, 0)),      # bias (f32)
                pl.BlockSpec((tm, 1), lambda i, k: (i, 0)),         # D^-1/2 row tile
            ],
            out_specs=pl.BlockSpec((tm, f_out), lambda i, k: (i, 0)),
            scratch_shapes=[pltpu.VMEM((tm, f_in), jnp.float32)],   # f32 accumulator
        ),
        compiler_params=pltpu.CompilerParams(
            dimension_semantics=("parallel", "arbitrary"),
            vmem_limit_bytes=48 * 1024 * 1024),
        cost_estimate=pl.CostEstimate(flops=flops, transcendentals=0,
                                      bytes_accessed=bytes_accessed),
    )(a01, v, w, b, d)


# ----------------------------------------------------------------------------
# Glue: 0/1(+self-loop) adjacency + D^-1/2, built directly padded in kernel dtype.
# ----------------------------------------------------------------------------
def build_graph_operands(edge_index, num_nodes, n_pad, a_dtype):
    src, dst = edge_index[0], edge_index[1]
    idx = jnp.arange(num_nodes)
    a = jnp.zeros((n_pad, n_pad), a_dtype)
    a = a.at[dst, src].add(jnp.ones(src.shape, a_dtype))      # A[t, s] += 1 per edge
    a = a.at[idx, idx].add(jnp.ones((num_nodes,), a_dtype))   # add self-loops
    # Degrees straight from the edge list (no N^2 read-back); padded rows stay 0.
    deg = jnp.zeros((n_pad,), jnp.float32).at[dst].add(1.0).at[idx].add(1.0)
    d_inv_sqrt = jnp.where(deg > 0.0, jax.lax.rsqrt(deg), 0.0)
    return a, d_inv_sqrt.reshape(n_pad, 1)


# ----------------------------------------------------------------------------
# Full forward: out = A_hat @ relu(A_hat @ X @ W1 + b1) @ W2 + b2
# ----------------------------------------------------------------------------
def gnn_forward(x, edge_index, w1, b1, w2, b2):
    n = x.shape[0]
    in_dim, hid = w1.shape
    out_dim = w2.shape[1]

    f_in = _round_up(in_dim, 128)      # lane-dense feature axes -> unmasked vst
    f_hid = _round_up(hid, 128)
    f_out = _round_up(out_dim, 128)

    fused = n <= FUSED_MAX_NODES
    n_pad = _round_up(n, 8) if fused else _round_up(n, TILE)

    a01, d = build_graph_operands(edge_index, n, n_pad, a_dtype=jnp.bfloat16)

    def pad2(m, rows, cols, dtype):
        buf = jnp.zeros((rows, cols), dtype)
        return buf.at[:m.shape[0], :m.shape[1]].set(m.astype(dtype))

    # Weights / biases stay f32 (tiny; preserves f32 accumulator precision).
    w1_p = pad2(w1, f_in, f_hid, jnp.float32)
    w2_p = pad2(w2, f_hid, f_out, jnp.float32)
    b1_p = pad2(b1.reshape(1, -1), 1, f_hid, jnp.float32)
    b2_p = pad2(b2.reshape(1, -1), 1, f_out, jnp.float32)

    if fused:
        x_p = pad2(x, n_pad, f_in, jnp.float32)
        y = gnn_fused(a01, d, x_p, w1_p, b1_p, w2_p, b2_p)
    else:
        tm = tk = TILE
        # Pre-scale X rows by D^-1/2 (O(N*f) op, negligible vs the N^2 A stream);
        # the kernel applies the matching d_i row scaling at the last k step and
        # emits layer 1's output already pre-scaled for layer 2 (scale_out=True).
        xs_p = pad2(d[:n] * x, n_pad, f_in, jnp.bfloat16)
        h = gcn_layer_tiled(a01, xs_p, w1_p, b1_p, d, apply_relu=True,
                            scale_out=True, out_dtype=jnp.bfloat16, tm=tm, tk=tk)
        y = gcn_layer_tiled(a01, h, w2_p, b2_p, d, apply_relu=False,
                            scale_out=False, out_dtype=jnp.float32, tm=tm, tk=tk)

    return y[:n, :out_dim]


# ----------------------------------------------------------------------------
# Pure-JAX f32 reference (torch_geometric gcn_norm semantics, self-loops added)
# ----------------------------------------------------------------------------
def gnn_ref(x, edge_index, w1, b1, w2, b2):
    n = x.shape[0]
    src, dst = edge_index[0], edge_index[1]
    a = jnp.zeros((n, n), jnp.float32).at[dst, src].add(1.0)
    a = a + jnp.eye(n, dtype=jnp.float32)
    deg = jnp.sum(a, axis=1)
    dis = jnp.where(deg > 0.0, 1.0 / jnp.sqrt(deg), 0.0)
    a_hat = dis[:, None] * a * dis[None, :]
    h = jnp.maximum(a_hat @ (x @ w1) + b1, 0.0)
    return a_hat @ (h @ w2) + b2


if __name__ == "__main__":
    def make_inputs(num_nodes, input_dim, hidden_dim, output_dim, seed):
        key = jax.random.PRNGKey(seed)
        kx, kw1, kw2 = jax.random.split(key, 3)
        x = jax.random.normal(kx, (num_nodes, input_dim), dtype=jnp.float32)
        # Deterministic edge_index: bidirectional ring + a few chords
        i = jnp.arange(num_nodes)
        src = jnp.concatenate([i, (i + 1) % num_nodes, i, (i + 3) % num_nodes])
        dst = jnp.concatenate([(i + 1) % num_nodes, i, (i + 3) % num_nodes, i])
        edge_index = jnp.stack([src, dst], axis=0)          # (2, E)
        # GCNConv params: weight (in, out) glorot-style, bias zeros
        w1 = jax.random.normal(kw1, (input_dim, hidden_dim), jnp.float32) * (
            1.0 / jnp.sqrt(jnp.float32(input_dim)))
        b1 = jnp.zeros((1, hidden_dim), jnp.float32)
        w2 = jax.random.normal(kw2, (hidden_dim, output_dim), jnp.float32) * (
            1.0 / jnp.sqrt(jnp.float32(hidden_dim)))
        b2 = jnp.zeros((1, output_dim), jnp.float32)
        return x, edge_index, w1, b1, w2, b2

    gnn = jax.jit(gnn_forward)

    # 1) Small graph (module's nominal sizes) -> fused single-kernel path (f32 math).
    args = make_inputs(num_nodes=16, input_dim=8, hidden_dim=32, output_dim=4, seed=0)
    out = jax.block_until_ready(gnn(*args))
    ref = gnn_ref(*args)
    assert out.shape == (16, 4)
    assert jnp.allclose(out, ref, atol=2e-2, rtol=2e-2), float(jnp.max(jnp.abs(out - ref)))

    # 2) Larger graph -> tiled per-layer path (512 tiles, resident X/H, exact 0/1 A).
    args = make_inputs(num_nodes=1500, input_dim=8, hidden_dim=32, output_dim=4, seed=0)
    out = jax.block_until_ready(gnn(*args))
    ref = gnn_ref(*args)
    assert out.shape == (1500, 4)
    assert jnp.allclose(out, ref, atol=5e-2, rtol=5e-2), float(jnp.max(jnp.abs(out - ref)))

    print("KERNEL_OK")
</pallas_src>

<mosaic_0001>
module attributes {stable_mosaic.version = 11 : i64} {
  func.func private @main(%arg0: i32) attributes {dimension_semantics = [#tpu.dimension_semantics<core_parallel>], iteration_bounds = array<i64: 2>, tpu.core_type = #tpu.core_type<sc_scalar_subcore>, window_params = []} {
    return
  }
}

module attributes {stable_mosaic.version = 11 : i64} {
  func.func private @main(%arg0: i32) attributes {dimension_semantics = [#tpu.dimension_semantics<core_parallel>], iteration_bounds = array<i64: 2>, tpu.core_type = #tpu.core_type<sc_scalar_subcore>, window_params = []} {
    return
  }
}

module attributes {stable_mosaic.version = 11 : i64} {
  func.func @gnn_fused_kernel(%arg0: memref<16x16xbf16, #tpu.memory_space<vmem>>, %arg1: memref<16x1xf32, #tpu.memory_space<vmem>>, %arg2: memref<16x128xf32, #tpu.memory_space<vmem>>, %arg3: memref<128x128xf32, #tpu.memory_space<vmem>>, %arg4: memref<1x128xf32, #tpu.memory_space<vmem>>, %arg5: memref<128x128xf32, #tpu.memory_space<vmem>>, %arg6: memref<1x128xf32, #tpu.memory_space<vmem>>, %arg7: memref<16x128xf32, #tpu.memory_space<vmem>>) attributes {dimension_semantics = [], scalar_prefetch = 0 : i64, scratch_operands = 0 : i64, tpu.core_type = #tpu.core_type<tc>} {
    %c0 = arith.constant 0 : index
    %c0_0 = arith.constant 0 : index
    %0 = vector.load %arg0[%c0, %c0_0] : memref<16x16xbf16, #tpu.memory_space<vmem>>, vector<16x16xbf16>
    %1 = arith.extf %0 : vector<16x16xbf16> to vector<16x16xf32>
    %c0_1 = arith.constant 0 : index
    %c0_2 = arith.constant 0 : index
    %2 = vector.load %arg1[%c0_1, %c0_2] : memref<16x1xf32, #tpu.memory_space<vmem>>, vector<16x1xf32>
    %c0_3 = arith.constant 0 : index
    %c0_4 = arith.constant 0 : index
    %3 = vector.load %arg2[%c0_3, %c0_4] : memref<16x128xf32, #tpu.memory_space<vmem>>, vector<16x128xf32>
    %4 = vector.broadcast %2 : vector<16x1xf32> to vector<16x128xf32>
    %5 = arith.mulf %4, %3 : vector<16x128xf32>
    %cst = arith.constant dense<0.000000e+00> : vector<16x128xf32>
    %6 = tpu.matmul %1, %5, %cst {dimension_numbers = #tpu.dot_dimension_numbers<[1], [0], [0], [1], [0, 0, 1, 1], [], []>} : vector<16x16xf32>, vector<16x128xf32>, vector<16x128xf32> -> vector<16x128xf32>
    %7 = vector.broadcast %2 : vector<16x1xf32> to vector<16x128xf32>
    %8 = arith.mulf %7, %6 : vector<16x128xf32>
    %c0_5 = arith.constant 0 : index
    %c0_6 = arith.constant 0 : index
    %9 = vector.load %arg3[%c0_5, %c0_6] : memref<128x128xf32, #tpu.memory_space<vmem>>, vector<128x128xf32>
    %cst_7 = arith.constant dense<0.000000e+00> : vector<16x128xf32>
    %10 = tpu.matmul %8, %9, %cst_7 {dimension_numbers = #tpu.dot_dimension_numbers<[1], [0], [0], [1], [0, 0, 1, 1], [], []>} : vector<16x128xf32>, vector<128x128xf32>, vector<16x128xf32> -> vector<16x128xf32>
    %c0_8 = arith.constant 0 : index
    %c0_9 = arith.constant 0 : index
    %11 = vector.load %arg4[%c0_8, %c0_9] : memref<1x128xf32, #tpu.memory_space<vmem>>, vector<1x128xf32>
    %12 = vector.broadcast %11 : vector<1x128xf32> to vector<16x128xf32>
    %13 = arith.addf %10, %12 : vector<16x128xf32>
    %cst_10 = arith.constant 0.000000e+00 : f32
    %14 = vector.broadcast %cst_10 : f32 to vector<16x128xf32>
    %15 = arith.maximumf %13, %14 : vector<16x128xf32>
    %16 = vector.broadcast %2 : vector<16x1xf32> to vector<16x128xf32>
    %17 = arith.mulf %16, %15 : vector<16x128xf32>
    %cst_11 = arith.constant dense<0.000000e+00> : vector<16x128xf32>
    %18 = tpu.matmul %1, %17, %cst_11 {dimension_numbers = #tpu.dot_dimension_numbers<[1], [0], [0], [1], [0, 0, 1, 1], [], []>} : vector<16x16xf32>, vector<16x128xf32>, vector<16x128xf32> -> vector<16x128xf32>
    %19 = vector.broadcast %2 : vector<16x1xf32> to vector<16x128xf32>
    %20 = arith.mulf %19, %18 : vector<16x128xf32>
    %c0_12 = arith.constant 0 : index
    %c0_13 = arith.constant 0 : index
    %21 = vector.load %arg5[%c0_12, %c0_13] : memref<128x128xf32, #tpu.memory_space<vmem>>, vector<128x128xf32>
    %cst_14 = arith.constant dense<0.000000e+00> : vector<16x128xf32>
    %22 = tpu.matmul %20, %21, %cst_14 {dimension_numbers = #tpu.dot_dimension_numbers<[1], [0], [0], [1], [0, 0, 1, 1], [], []>} : vector<16x128xf32>, vector<128x128xf32>, vector<16x128xf32> -> vector<16x128xf32>
    %c0_15 = arith.constant 0 : index
    %c0_16 = arith.constant 0 : index
    %23 = vector.load %arg6[%c0_15, %c0_16] : memref<1x128xf32, #tpu.memory_space<vmem>>, vector<1x128xf32>
    %24 = vector.broadcast %23 : vector<1x128xf32> to vector<16x128xf32>
    %25 = arith.addf %22, %24 : vector<16x128xf32>
    %c0_17 = arith.constant 0 : index
    %c0_18 = arith.constant 0 : index
    %26 = vector.load %arg7[%c0_17, %c0_18] : memref<16x128xf32, #tpu.memory_space<vmem>>, vector<16x128xf32>
    tpu.vector_store %arg7[%c0_17, %c0_18], %25 {strides = array<i32>} : memref<16x128xf32, #tpu.memory_space<vmem>>, vector<16x128xf32>,
    return
  }
}

</mosaic_0001>

<llo_original>
// kernel: gnn_forward.1
$region0: #{gnn_forward.1}
  #allocation0 [shape = 'u32[]', space=smem, size = 0x4, offset = 0x4, fixed_abs, tag = 'smem constant byte address 0x4 - core index']
  #allocation1 [shape = 'u32[144,128]{1,0:T(1,128)}', space=vmem, size = 0x12000, scoped, tag = 'internal scratch']
  %s0 = inlined_call_operand.vmem [shape: bf16[16,16], index: 0, kind: input, shape index: {}]
  %s1 = inlined_call_operand.vmem [shape: f32[16,1], index: 1, kind: input, shape index: {}]
  %s2 = inlined_call_operand.vmem [shape: f32[16,128], index: 2, kind: input, shape index: {}]
  %s3 = inlined_call_operand.vmem [shape: f32[128,128], index: 3, kind: input, shape index: {}]
  %s4 = inlined_call_operand.vmem [shape: f32[1,128], index: 4, kind: input, shape index: {}]
  %s5 = inlined_call_operand.vmem [shape: f32[128,128], index: 5, kind: input, shape index: {}]
  %s6 = inlined_call_operand.vmem [shape: f32[1,128], index: 6, kind: input, shape index: {}]
  %s7 = inlined_call_operand.vmem [shape: f32[16,128], index: 7, kind: output, shape index: {}]
  %s8 = sld [smem:[#allocation0]]
  $region38: #{gnn_forward.1} parent=0
    _
  %s10 = ssub.s32 1, %s8
  %s11 = scalar_select 0, %s10, %s8
  // Predicated region
  $region2: #{gnn_forward.1} parent=0 // pred_check
    _
  $region3: #{gnn_forward.1} parent=0 // pred_check_branch
    %13 = sbr.rel (0) target = $region5
  $region4: #{gnn_forward.1} parent=0 // pred_region
    _
  $region5: #{gnn_forward.1} parent=0 // pred_fallthru
    _
  // Predicated region
  $region6: #{gnn_forward.1} parent=0 // pred_check
    _
  $region7: #{gnn_forward.1} parent=0 // pred_check_branch
    %15 = sbr.rel (0) target = $region9
  $region8: #{gnn_forward.1} parent=0 // pred_region
    _
  $region9: #{gnn_forward.1} parent=0 // pred_fallthru
    _
  // Predicated region
  $region10: #{gnn_forward.1} parent=0 // pred_check
    _
  $region11: #{gnn_forward.1} parent=0 // pred_check_branch
    %17 = sbr.rel (0) target = $region13
  $region12: #{gnn_forward.1} parent=0 // pred_region
    _
  $region13: #{gnn_forward.1} parent=0 // pred_fallthru
    _
  // Predicated region
  $region14: #{gnn_forward.1} parent=0 // pred_check
    _
  $region15: #{gnn_forward.1} parent=0 // pred_check_branch
    %19 = sbr.rel (0) target = $region17
  $region16: #{gnn_forward.1} parent=0 // pred_region
    _
  $region17: #{gnn_forward.1} parent=0 // pred_fallthru
    _
  // Predicated region
  $region18: #{gnn_forward.1} parent=0 // pred_check
    _
  $region19: #{gnn_forward.1} parent=0 // pred_check_branch
    %21 = sbr.rel (0) target = $region21
  $region20: #{gnn_forward.1} parent=0 // pred_region
    _
  $region21: #{gnn_forward.1} parent=0 // pred_fallthru
    _
  // Predicated region
  $region22: #{gnn_forward.1} parent=0 // pred_check
    _
  $region23: #{gnn_forward.1} parent=0 // pred_check_branch
    %23 = sbr.rel (0) target = $region25
  $region24: #{gnn_forward.1} parent=0 // pred_region
    _
  $region25: #{gnn_forward.1} parent=0 // pred_fallthru
    _
  // Predicated region
  $region26: #{gnn_forward.1} parent=0 // pred_check
    _
  $region27: #{gnn_forward.1} parent=0 // pred_check_branch
    %25 = sbr.rel (0) target = $region29
  $region28: #{gnn_forward.1} parent=0 // pred_region
    _
  $region29: #{gnn_forward.1} parent=0 // pred_fallthru
    _
  %v26 = vld [vmem:[%s0] sm:$0xf]
  %v27 = vld [vmem:[%s0 + $0x4] sm:$0xf]
  %v28 = vunpack.c.l.bf16 %v26
  %v29 = vunpack.c.l.bf16 %v27
  %v30 = vld [vmem:[%s1] sm:$0xff]
  %v31 = vld [vmem:[%s1 + $0x8] sm:$0xff]
  %v32 = vld [vmem:[%s2] sm:$0xff]
  %v33 = vld [vmem:[%s2 + $0x8] sm:$0xff]
  %35 = vset.pattern.permute.xlu0 0
  %36 = vperm.xlu0 %35, %v30
  %v37 = vpop.permute.xlu0 %36
  %40 = vset.pattern.permute.xlu0 0
  %41 = vperm.xlu0 %40, %v31
  %v42 = vpop.permute.xlu0 %41
  %v44 = vmul.f32 %v37, %v32
  %v45 = vmul.f32 %v42, %v33
  %vm46 = vcmask 130048
  %v48 = vsel %vm46, %v28, 0
  %v51 = vsel %vm46, %v29, 0
  %53 = vmatprep.subr.mxu0 0.0
  %54 = vmatpush1.msra.mxu0 %v44
  %55 = vmatprep.subr.mxu0 0.0
  %56 = vmatpush1.msra.mxu0 %v45
  %57 = vmatprep.subr.mxu0 0.0
  %58 = vmatpush1.msra.mxu0 0.0
  %59 = vmatprep.subr.mxu0 0.0
  %60 = vmatpush1.msra.mxu0 0.0
  %61 = vmatprep.subr.mxu0 0.0
  %62 = vmatpush1.msra.mxu0 0.0
  %63 = vmatprep.subr.mxu0 0.0
  %64 = vmatpush1.msra.mxu0 0.0
  %65 = vmatprep.subr.mxu0 0.0
  %66 = vmatpush1.msra.mxu0 0.0
  %67 = vmatprep.subr.mxu0 0.0
  %68 = vmatpush1.msra.mxu0 0.0
  %69 = vmatprep.subr.mxu0 0.0
  %70 = vmatpush1.msra.mxu0 0.0
  %71 = vmatprep.subr.mxu0 0.0
  %72 = vmatpush1.msra.mxu0 0.0
  %73 = vmatprep.subr.mxu0 0.0
  %74 = vmatpush1.msra.mxu0 0.0
  %75 = vmatprep.subr.mxu0 0.0
  %76 = vmatpush1.msra.mxu0 0.0
  %77 = vmatprep.subr.mxu0 0.0
  %78 = vmatpush1.msra.mxu0 0.0
  %79 = vmatprep.subr.mxu0 0.0
  %80 = vmatpush1.msra.mxu0 0.0
  %81 = vmatprep.subr.mxu0 0.0
  %82 = vmatpush1.msra.mxu0 0.0
  %83 = vmatprep.subr.mxu0 0.0
  %84 = vmatpush1.msra.mxu0 0.0
  %85 = vmatprep.subr.mxu0 0.0
  %86 = vmatpush1.msra.mxu0 0.0
  %87 = vmatprep.subr.mxu0 0.0
  %88 = vmatpush1.msra.mxu0 0.0
  %89 = vmatprep.subr.mxu0 0.0
  %90 = vmatpush1.msra.mxu0 0.0
  %91 = vmatprep.subr.mxu0 0.0
  %92 = vmatpush1.msra.mxu0 0.0
  %93 = vmatprep.subr.mxu0 0.0
  %94 = vmatpush1.msra.mxu0 0.0
  %95 = vmatprep.subr.mxu0 0.0
  %96 = vmatpush1.msra.mxu0 0.0
  %97 = vmatprep.subr.mxu0 0.0
  %98 = vmatpush1.msra.mxu0 0.0
  %99 = vmatprep.subr.mxu0 0.0
  %100 = vmatpush1.msra.mxu0 0.0
  %101 = vmatprep.subr.mxu0 0.0
  %102 = vmatpush1.msra.mxu0 0.0
  %103 = vmatprep.subr.mxu0 0.0
  %104 = vmatpush1.msra.mxu0 0.0
  %105 = vmatprep.subr.mxu0 0.0
  %106 = vmatpush1.msra.mxu0 0.0
  %107 = vmatprep.subr.mxu0 0.0
  %108 = vmatpush1.msra.mxu0 0.0
  %109 = vmatprep.subr.mxu0 0.0
  %110 = vmatpush1.msra.mxu0 0.0
  %111 = vmatprep.subr.mxu0 0.0
  %112 = vmatpush1.msra.mxu0 0.0
  %113 = vmatprep.subr.mxu0 0.0
  %114 = vmatpush1.msra.mxu0 0.0
  %115 = vmatprep.subr.mxu0 0.0
  %116 = vmatpush1.msra.mxu0 0.0
  %117 = vmatprep.mubr.f32.mxu0 0.0
  %118 = vmatmul.mubr.f32.gmra.mrb[0].mxu0 %v48
  %v119 = vpop.f32.mrb[0].mxu0
  %v120 = vadd.f32 0.0, %v119
  %v121 = vpop.f32.mrb[0].mxu0
  %122 = vmatprep.mubr.f32.mxu0 0.0
  %123 = vmatmul.mubr.f32.gmra.mrb[0].mxu0 %v51
  %v124 = vpop.f32.mrb[0].mxu0
  %v125 = vadd.f32 0.0, %v124
  %v126 = vpop.f32.mrb[0].mxu0
  %127 = vdwg.mxu0
  %v128 = vmul.f32 %v37, %v120
  %v129 = vmul.f32 %v42, %v125
  %v130 = vld [vmem:[%s3] sm:$0xff]
  %v131 = vld [vmem:[%s3 + $0x8] sm:$0xff]
  %v132 = vld [vmem:[%s3 + $0x10] sm:$0xff]
  %v133 = vld [vmem:[%s3 + $0x18] sm:$0xff]
  %v134 = vld [vmem:[%s3 + $0x20] sm:$0xff]
  %v135 = vld [vmem:[%s3 + $0x28] sm:$0xff]
  %v136 = vld [vmem:[%s3 + $0x30] sm:$0xff]
  %v137 = vld [vmem:[%s3 + $0x38] sm:$0xff]
  %v138 = vld [vmem:[%s3 + $0x40] sm:$0xff]
  %v139 = vld [vmem:[%s3 + $0x48] sm:$0xff]
  %v140 = vld [vmem:[%s3 + $0x50] sm:$0xff]
  %v141 = vld [vmem:[%s3 + $0x58] sm:$0xff]
  %v142 = vld [vmem:[%s3 + $0x60] sm:$0xff]
  %v143 = vld [vmem:[%s3 + $0x68] sm:$0xff]
  %v144 = vld [vmem:[%s3 + $0x70] sm:$0xff]
  %v145 = vld [vmem:[%s3 + $0x78] sm:$0xff]
  %v146 = vld [vmem:[%s4] sm:$0x1]
  %v148 = vlaneseq
  %v149 = vshrl.u32 %v148, 7
  %v150 = vsub.s32 0, %v149
  %v151 = vrot.slane %v146, %v150
  %153 = vmatprep.subr.mxu0 0.0
  %154 = vmatpush1.msra.mxu0 %v130
  %155 = vmatprep.subr.mxu0 0.0
  %156 = vmatpush1.msra.mxu0 %v131
  %157 = vmatprep.subr.mxu0 0.0
  %158 = vmatpush1.msra.mxu0 %v132
  %159 = vmatprep.subr.mxu0 0.0
  %160 = vmatpush1.msra.mxu0 %v133
  %161 = vmatprep.subr.mxu0 0.0
  %162 = vmatpush1.msra.mxu0 %v134
  %163 = vmatprep.subr.mxu0 0.0
  %164 = vmatpush1.msra.mxu0 %v135
  %165 = vmatprep.subr.mxu0 0.0
  %166 = vmatpush1.msra.mxu0 %v136
  %167 = vmatprep.subr.mxu0 0.0
  %168 = vmatpush1.msra.mxu0 %v137
  %169 = vmatprep.subr.mxu0 0.0
  %170 = vmatpush1.msra.mxu0 %v138
  %171 = vmatprep.subr.mxu0 0.0
  %172 = vmatpush1.msra.mxu0 %v139
  %173 = vmatprep.subr.mxu0 0.0
  %174 = vmatpush1.msra.mxu0 %v140
  %175 = vmatprep.subr.mxu0 0.0
  %176 = vmatpush1.msra.mxu0 %v141
  %177 = vmatprep.subr.mxu0 0.0
  %178 = vmatpush1.msra.mxu0 %v142
  %179 = vmatprep.subr.mxu0 0.0
  %180 = vmatpush1.msra.mxu0 %v143
  %181 = vmatprep.subr.mxu0 0.0
  %182 = vmatpush1.msra.mxu0 %v144
  %183 = vmatprep.subr.mxu0 0.0
  %184 = vmatpush1.msra.mxu0 %v145
  %185 = vmatprep.subr.mxu0 0.0
  %186 = vmatpush1.msra.mxu0 0.0
  %187 = vmatprep.subr.mxu0 0.0
  %188 = vmatpush1.msra.mxu0 0.0
  %189 = vmatprep.subr.mxu0 0.0
  %190 = vmatpush1.msra.mxu0 0.0
  %191 = vmatprep.subr.mxu0 0.0
  %192 = vmatpush1.msra.mxu0 0.0
  %193 = vmatprep.subr.mxu0 0.0
  %194 = vmatpush1.msra.mxu0 0.0
  %195 = vmatprep.subr.mxu0 0.0
  %196 = vmatpush1.msra.mxu0 0.0
  %197 = vmatprep.subr.mxu0 0.0
  %198 = vmatpush1.msra.mxu0 0.0
  %199 = vmatprep.subr.mxu0 0.0
  %200 = vmatpush1.msra.mxu0 0.0
  %201 = vmatprep.subr.mxu0 0.0
  %202 = vmatpush1.msra.mxu0 0.0
  %203 = vmatprep.subr.mxu0 0.0
  %204 = vmatpush1.msra.mxu0 0.0
  %205 = vmatprep.subr.mxu0 0.0
  %206 = vmatpush1.msra.mxu0 0.0
  %207 = vmatprep.subr.mxu0 0.0
  %208 = vmatpush1.msra.mxu0 0.0
  %209 = vmatprep.subr.mxu0 0.0
  %210 = vmatpush1.msra.mxu0 0.0
  %211 = vmatprep.subr.mxu0 0.0
  %212 = vmatpush1.msra.mxu0 0.0
  %213 = vmatprep.subr.mxu0 0.0
  %214 = vmatpush1.msra.mxu0 0.0
  %215 = vmatprep.subr.mxu0 0.0
  %216 = vmatpush1.msra.mxu0 0.0
  %217 = vmatprep.mubr.f32.mxu0 0.0
  %218 = vmatmul.mubr.f32.gmra.mrb[0].mxu0 %v128
  %v219 = vpop.f32.mrb[0].mxu0
  %v220 = vadd.f32 %v151, %v219
  %v221 = vpop.f32.mrb[0].mxu0
  %222 = vmatprep.mubr.f32.mxu0 0.0
  %223 = vmatmul.mubr.f32.gmra.mrb[0].mxu0 %v129
  %v224 = vpop.f32.mrb[0].mxu0
  %v225 = vadd.f32 %v151, %v224
  %v226 = vpop.f32.mrb[0].mxu0
  %227 = vdwg.mxu0
  %v228 = vmax.f32 %v220, 0.0
  %v229 = vmax.f32 %v225, 0.0
  %v230 = vmul.f32 %v37, %v228
  %v231 = vmul.f32 %v42, %v229
  %232 = vmatprep.subr.mxu0 0.0
  %233 = vmatpush1.msra.mxu0 %v230
  %234 = vmatprep.subr.mxu0 0.0
  %235 = vmatpush1.msra.mxu0 %v231
  %236 = vmatprep.subr.mxu0 0.0
  %237 = vmatpush1.msra.mxu0 0.0
  %238 = vmatprep.subr.mxu0 0.0
  %239 = vmatpush1.msra.mxu0 0.0
  %240 = vmatprep.subr.mxu0 0.0
  %241 = vmatpush1.msra.mxu0 0.0
  %242 = vmatprep.subr.mxu0 0.0
  %243 = vmatpush1.msra.mxu0 0.0
  %244 = vmatprep.subr.mxu0 0.0
  %245 = vmatpush1.msra.mxu0 0.0
  %246 = vmatprep.subr.mxu0 0.0
  %247 = vmatpush1.msra.mxu0 0.0
  %248 = vmatprep.subr.mxu0 0.0
  %249 = vmatpush1.msra.mxu0 0.0
  %250 = vmatprep.subr.mxu0 0.0
  %251 = vmatpush1.msra.mxu0 0.0
  %252 = vmatprep.subr.mxu0 0.0
  %253 = vmatpush1.msra.mxu0 0.0
  %254 = vmatprep.subr.mxu0 0.0
  %255 = vmatpush1.msra.mxu0 0.0
  %256 = vmatprep.subr.mxu0 0.0
  %257 = vmatpush1.msra.mxu0 0.0
  %258 = vmatprep.subr.mxu0 0.0
  %259 = vmatpush1.msra.mxu0 0.0
  %260 = vmatprep.subr.mxu0 0.0
  %261 = vmatpush1.msra.mxu0 0.0
  %262 = vmatprep.subr.mxu0 0.0
  %263 = vmatpush1.msra.mxu0 0.0
  %264 = vmatprep.subr.mxu0 0.0
  %265 = vmatpush1.msra.mxu0 0.0
  %266 = vmatprep.subr.mxu0 0.0
  %267 = vmatpush1.msra.mxu0 0.0
  %268 = vmatprep.subr.mxu0 0.0
  %269 = vmatpush1.msra.mxu0 0.0
  %270 = vmatprep.subr.mxu0 0.0
  %271 = vmatpush1.msra.mxu0 0.0
  %272 = vmatprep.subr.mxu0 0.0
  %273 = vmatpush1.msra.mxu0 0.0
  %274 = vmatprep.subr.mxu0 0.0
  %275 = vmatpush1.msra.mxu0 0.0
  %276 = vmatprep.subr.mxu0 0.0
  %277 = vmatpush1.msra.mxu0 0.0
  %278 = vmatprep.subr.mxu0 0.0
  %279 = vmatpush1.msra.mxu0 0.0
  %280 = vmatprep.subr.mxu0 0.0
  %281 = vmatpush1.msra.mxu0 0.0
  %282 = vmatprep.subr.mxu0 0.0
  %283 = vmatpush1.msra.mxu0 0.0
  %284 = vmatprep.subr.mxu0 0.0
  %285 = vmatpush1.msra.mxu0 0.0
  %286 = vmatprep.subr.mxu0 0.0
  %287 = vmatpush1.msra.mxu0 0.0
  %288 = vmatprep.subr.mxu0 0.0
  %289 = vmatpush1.msra.mxu0 0.0
  %290 = vmatprep.subr.mxu0 0.0
  %291 = vmatpush1.msra.mxu0 0.0
  %292 = vmatprep.subr.mxu0 0.0
  %293 = vmatpush1.msra.mxu0 0.0
  %294 = vmatprep.subr.mxu0 0.0
  %295 = vmatpush1.msra.mxu0 0.0
  %296 = vmatprep.mubr.f32.mxu0 0.0
  %297 = vmatmul.mubr.f32.gmra.mrb[0].mxu0 %v48
  %v298 = vpop.f32.mrb[0].mxu0
  %v299 = vadd.f32 0.0, %v298
  %v300 = vpop.f32.mrb[0].mxu0
  %301 = vmatprep.mubr.f32.mxu0 0.0
  %302 = vmatmul.mubr.f32.gmra.mrb[0].mxu0 %v51
  %v303 = vpop.f32.mrb[0].mxu0
  %v304 = vadd.f32 0.0, %v303
  %v305 = vpop.f32.mrb[0].mxu0
  %306 = vdwg.mxu0
  %v307 = vmul.f32 %v37, %v299
  %v308 = vmul.f32 %v42, %v304
  %v309 = vld [vmem:[%s5] sm:$0xff]
  %v310 = vld [vmem:[%s5 + $0x8] sm:$0xff]
  %v311 = vld [vmem:[%s5 + $0x10] sm:$0xff]
  %v312 = vld [vmem:[%s5 + $0x18] sm:$0xff]
  %v313 = vld [vmem:[%s5 + $0x20] sm:$0xff]
  %v314 = vld [vmem:[%s5 + $0x28] sm:$0xff]
  %v315 = vld [vmem:[%s5 + $0x30] sm:$0xff]
  %v316 = vld [vmem:[%s5 + $0x38] sm:$0xff]
  %v317 = vld [vmem:[%s5 + $0x40] sm:$0xff]
  %v318 = vld [vmem:[%s5 + $0x48] sm:$0xff]
  %v319 = vld [vmem:[%s5 + $0x50] sm:$0xff]
  %v320 = vld [vmem:[%s5 + $0x58] sm:$0xff]
  %v321 = vld [vmem:[%s5 + $0x60] sm:$0xff]
  %v322 = vld [vmem:[%s5 + $0x68] sm:$0xff]
  %v323 = vld [vmem:[%s5 + $0x70] sm:$0xff]
  %v324 = vld [vmem:[%s5 + $0x78] sm:$0xff]
  %v325 = vld [vmem:[%s6] sm:$0x1]
  %v327 = vlaneseq
  %v328 = vshrl.u32 %v327, 7
  %v329 = vsub.s32 0, %v328
  %v330 = vrot.slane %v325, %v329
  %332 = vmatprep.subr.mxu0 0.0
  %333 = vmatpush1.msra.mxu0 %v309
  %334 = vmatprep.subr.mxu0 0.0
  %335 = vmatpush1.msra.mxu0 %v310
  %336 = vmatprep.subr.mxu0 0.0
  %337 = vmatpush1.msra.mxu0 %v311
  %338 = vmatprep.subr.mxu0 0.0
  %339 = vmatpush1.msra.mxu0 %v312
  %340 = vmatprep.subr.mxu0 0.0
  %341 = vmatpush1.msra.mxu0 %v313
  %342 = vmatprep.subr.mxu0 0.0
  %343 = vmatpush1.msra.mxu0 %v314
  %344 = vmatprep.subr.mxu0 0.0
  %345 = vmatpush1.msra.mxu0 %v315
  %346 = vmatprep.subr.mxu0 0.0
  %347 = vmatpush1.msra.mxu0 %v316
  %348 = vmatprep.subr.mxu0 0.0
  %349 = vmatpush1.msra.mxu0 %v317
  %350 = vmatprep.subr.mxu0 0.0
  %351 = vmatpush1.msra.mxu0 %v318
  %352 = vmatprep.subr.mxu0 0.0
  %353 = vmatpush1.msra.mxu0 %v319
  %354 = vmatprep.subr.mxu0 0.0
  %355 = vmatpush1.msra.mxu0 %v320
  %356 = vmatprep.subr.mxu0 0.0
  %357 = vmatpush1.msra.mxu0 %v321
  %358 = vmatprep.subr.mxu0 0.0
  %359 = vmatpush1.msra.mxu0 %v322
  %360 = vmatprep.subr.mxu0 0.0
  %361 = vmatpush1.msra.mxu0 %v323
  %362 = vmatprep.subr.mxu0 0.0
  %363 = vmatpush1.msra.mxu0 %v324
  %364 = vmatprep.subr.mxu0 0.0
  %365 = vmatpush1.msra.mxu0 0.0
  %366 = vmatprep.subr.mxu0 0.0
  %367 = vmatpush1.msra.mxu0 0.0
  %368 = vmatprep.subr.mxu0 0.0
  %369 = vmatpush1.msra.mxu0 0.0
  %370 = vmatprep.subr.mxu0 0.0
  %371 = vmatpush1.msra.mxu0 0.0
  %372 = vmatprep.subr.mxu0 0.0
  %373 = vmatpush1.msra.mxu0 0.0
  %374 = vmatprep.subr.mxu0 0.0
  %375 = vmatpush1.msra.mxu0 0.0
  %376 = vmatprep.subr.mxu0 0.0
  %377 = vmatpush1.msra.mxu0 0.0
  %378 = vmatprep.subr.mxu0 0.0
  %379 = vmatpush1.msra.mxu0 0.0
  %380 = vmatprep.subr.mxu0 0.0
  %381 = vmatpush1.msra.mxu0 0.0
  %382 = vmatprep.subr.mxu0 0.0
  %383 = vmatpush1.msra.mxu0 0.0
  %384 = vmatprep.subr.mxu0 0.0
  %385 = vmatpush1.msra.mxu0 0.0
  %386 = vmatprep.subr.mxu0 0.0
  %387 = vmatpush1.msra.mxu0 0.0
  %388 = vmatprep.subr.mxu0 0.0
  %389 = vmatpush1.msra.mxu0 0.0
  %390 = vmatprep.subr.mxu0 0.0
  %391 = vmatpush1.msra.mxu0 0.0
  %392 = vmatprep.subr.mxu0 0.0
  %393 = vmatpush1.msra.mxu0 0.0
  %394 = vmatprep.subr.mxu0 0.0
  %395 = vmatpush1.msra.mxu0 0.0
  %396 = vmatprep.mubr.f32.mxu0 0.0
  %397 = vmatmul.mubr.f32.gmra.mrb[0].mxu0 %v307
  %v398 = vpop.f32.mrb[0].mxu0
  %v399 = vadd.f32 %v330, %v398
  %v400 = vpop.f32.mrb[0].mxu0
  %401 = vmatprep.mubr.f32.mxu0 0.0
  %402 = vmatmul.mubr.f32.gmra.mrb[0].mxu0 %v308
  %v403 = vpop.f32.mrb[0].mxu0
  %v404 = vadd.f32 %v330, %v403
  %v405 = vpop.f32.mrb[0].mxu0
  %406 = vdwg.mxu0
  %407 = vst [vmem:[%s7] sm:$0xff] %v399
  %408 = vst [vmem:[%s7 + $0x8] sm:$0xff] %v404
  // Predicated region
  $region30: #{gnn_forward.1} parent=0 // pred_check
    _
  $region31: #{gnn_forward.1} parent=0 // pred_check_branch
    %410 = sbr.rel (0) target = $region33
  $region32: #{gnn_forward.1} parent=0 // pred_region
    _
  $region33: #{gnn_forward.1} parent=0 // pred_fallthru
    _
  // Predicated region
  $region34: #{gnn_forward.1} parent=0 // pred_check
    _
  $region35: #{gnn_forward.1} parent=0 // pred_check_branch
    %412 = sbr.rel (0) target = $region37
  $region36: #{gnn_forward.1} parent=0 // pred_region
    _
  $region37: #{gnn_forward.1} parent=0 // pred_fallthru
    _

</llo_original>
